<compile_context>
chip_gen: v7x
topology: tpu7x:2x2x1
jax: 0.10.0
libtpu: 0.0.40
codegen_flags: <defaults>
</compile_context>

<pallas_src>
import jax
import jax.numpy as jnp
from jax.experimental import pallas as pl
from jax.experimental.pallas import tpu as pltpu


# ---------------------------------------------------------------------------
# Kernel: streaming scale + shift over (batch, feature) tiles.
# ---------------------------------------------------------------------------
def _affine_apply_kernel(z_ref, s_ref, t_ref, x_ref):
    z = z_ref[...].astype(jnp.float32)                       # (tb, td)  VPU
    scale = jnp.exp(s_ref[...].astype(jnp.float32))          # (1,  td)  EUP (free)
    shift = t_ref[...].astype(jnp.float32)                   # (1,  td)
    x_ref[...] = (z * scale + shift).astype(x_ref.dtype)     # broadcast over rows


# ---------------------------------------------------------------------------
# Tile sizing: bytes-based, generation-aware.
# ---------------------------------------------------------------------------
def _round_down(x, m):
    return (x // m) * m


def _round_up(x, m):
    return ((x + m - 1) // m) * m


def _pick_tiles(B, D, dtype):
    itemsize = jnp.dtype(dtype).itemsize
    sub = max(8, 32 // max(itemsize, 1))      # packed sublane multiple: 8/16/32
    lane = 128

    try:
        vmem_bytes = int(pltpu.get_tpu_info().vmem_capacity_bytes)
    except Exception:
        vmem_bytes = 64 * 1024 * 1024          # conservative (v7x per-TC) fallback

    # ~4 live (tb, td) buffers (double-buffered z in + x out) must fit easily.
    target_block_bytes = min(4 * 1024 * 1024, max(512 * 1024, vmem_bytes // 16))

    # Feature tile: keep the full (lane-dense) D unless even a minimal-row
    # block would overflow the per-block budget (very large D fallback).
    td = D
    if sub * D * itemsize > target_block_bytes and D > lane:
        td = min(D, max(lane, _round_down(target_block_bytes // (sub * itemsize), lane)))

    # Batch tile: as many rows as the block budget allows, but keep >= 2 grid
    # steps (v7x megacore sharding) once there are at least two row-tiles.
    max_rows = max(sub, _round_down(target_block_bytes // (td * itemsize), sub))
    if B >= 2 * sub:
        max_rows = min(max_rows, _round_up(-(-B // 2), sub))
    tb = B if max_rows >= B else max_rows      # full-dim block is always legal
    return tb, td


# ---------------------------------------------------------------------------
# Wrapper.
# ---------------------------------------------------------------------------
@jax.jit
def affine_constant_flow_forward(z, s, t):
    """z: (B, D); s, t: (1, D).  Returns (x: (B, D), log_det: (1,))."""
    B, D = z.shape
    tb, td = _pick_tiles(B, D, z.dtype)
    grid = (pl.cdiv(B, tb), pl.cdiv(D, td))

    x = pl.pallas_call(
        _affine_apply_kernel,
        out_shape=jax.ShapeDtypeStruct((B, D), z.dtype),
        grid_spec=pltpu.PrefetchScalarGridSpec(
            num_scalar_prefetch=0,
            grid=grid,
            in_specs=[
                pl.BlockSpec((tb, td), lambda i, j: (i, j)),  # z tile, streamed
                pl.BlockSpec((1, td), lambda i, j: (0, j)),   # s, resident per j
                pl.BlockSpec((1, td), lambda i, j: (0, j)),   # t, resident per j
            ],
            out_specs=pl.BlockSpec((tb, td), lambda i, j: (i, j)),
        ),
        compiler_params=pltpu.CompilerParams(
            dimension_semantics=("parallel", "parallel"),
            vmem_limit_bytes=48 * 1024 * 1024,
        ),
    )(z, s, t)

    # Trivial (1, D) reduction: leave it to XLA (no second kernel launch).
    log_det = jnp.sum(s, axis=1)
    return x, log_det


def reference_forward(z, s, t):
    x = z * jnp.exp(s) + t
    log_det = jnp.sum(s, axis=1)
    return x, log_det


if __name__ == "__main__":
    key = jax.random.PRNGKey(0)
    k_z, k_s, k_t, k_z2 = jax.random.split(key, 4)

    # Small shape matching the module's forward (batch, dim).
    B, D = 8, 128
    z = jax.random.normal(k_z, (B, D), dtype=jnp.float32)
    # Deterministic "learned" parameters (scale=True, shift=True).  For
    # scale=False / shift=False the module uses zeros -- pass zeros here too.
    s = jax.random.normal(k_s, (1, D), dtype=jnp.float32)
    t = jax.random.normal(k_t, (1, D), dtype=jnp.float32)

    x, log_det = affine_constant_flow_forward(z, s, t)
    jax.block_until_ready((x, log_det))

    x_ref, ld_ref = reference_forward(z, s, t)
    assert x.shape == (B, D) and log_det.shape == (1,)
    assert jnp.allclose(x, x_ref, atol=1e-5, rtol=1e-5)
    assert jnp.allclose(log_det, ld_ref, atol=1e-4, rtol=1e-5)

    # Also exercise the multi-tile (gridded, double-buffered, 2-step) path.
    B2 = 1024
    z2 = jax.random.normal(k_z2, (B2, D), dtype=jnp.float32)
    x2, log_det2 = affine_constant_flow_forward(z2, s, t)
    jax.block_until_ready((x2, log_det2))
    x2_ref, ld2_ref = reference_forward(z2, s, t)
    assert jnp.allclose(x2, x2_ref, atol=1e-5, rtol=1e-5)
    assert jnp.allclose(log_det2, ld2_ref, atol=1e-4, rtol=1e-5)

    print("KERNEL_OK")
</pallas_src>

<mosaic_0001>
module attributes {stable_mosaic.version = 11 : i64} {
  func.func @_affine_apply_kernel(%arg0: i32, %arg1: i32, %arg2: memref<8x128xf32, #tpu.memory_space<vmem>>, %arg3: memref<1x128xf32, #tpu.memory_space<vmem>>, %arg4: memref<1x128xf32, #tpu.memory_space<vmem>>, %arg5: memref<8x128xf32, #tpu.memory_space<vmem>>) attributes {dimension_semantics = [#tpu.dimension_semantics<parallel>, #tpu.dimension_semantics<parallel>], iteration_bounds = array<i64: 1, 1>, scalar_prefetch = 0 : i64, scratch_operands = 0 : i64, tpu.core_type = #tpu.core_type<tc>, window_params = [{transform_indices = @transform_0, window_bounds = array<i64: 8, 128>}, {transform_indices = @transform_1, window_bounds = array<i64: 1, 128>}, {transform_indices = @transform_2, window_bounds = array<i64: 1, 128>}, {transform_indices = @transform_3, window_bounds = array<i64: 8, 128>}]} {
    %c0 = arith.constant 0 : index
    %c0_0 = arith.constant 0 : index
    %0 = vector.load %arg2[%c0, %c0_0] : memref<8x128xf32, #tpu.memory_space<vmem>>, vector<8x128xf32>
    %c0_1 = arith.constant 0 : index
    %c0_2 = arith.constant 0 : index
    %1 = vector.load %arg3[%c0_1, %c0_2] : memref<1x128xf32, #tpu.memory_space<vmem>>, vector<1x128xf32>
    %2 = math.exp %1 : vector<1x128xf32>
    %c0_3 = arith.constant 0 : index
    %c0_4 = arith.constant 0 : index
    %3 = vector.load %arg4[%c0_3, %c0_4] : memref<1x128xf32, #tpu.memory_space<vmem>>, vector<1x128xf32>
    %4 = vector.broadcast %2 : vector<1x128xf32> to vector<8x128xf32>
    %5 = arith.mulf %0, %4 : vector<8x128xf32>
    %6 = vector.broadcast %3 : vector<1x128xf32> to vector<8x128xf32>
    %7 = arith.addf %5, %6 : vector<8x128xf32>
    %c0_5 = arith.constant 0 : index
    %c0_6 = arith.constant 0 : index
    %8 = vector.load %arg5[%c0_5, %c0_6] : memref<8x128xf32, #tpu.memory_space<vmem>>, vector<8x128xf32>
    tpu.vector_store %arg5[%c0_5, %c0_6], %7 {strides = array<i32>} : memref<8x128xf32, #tpu.memory_space<vmem>>, vector<8x128xf32>,
    return
  }
  func.func @transform_0(%arg0: i32, %arg1: i32) -> (i32, i32) {
    %c0_i32 = arith.constant 0 : i32
    return %arg0, %arg1 : i32, i32
  }
  func.func @transform_1(%arg0: i32, %arg1: i32) -> (i32, i32) {
    %c0_i32 = arith.constant 0 : i32
    %c0_i32_0 = arith.constant 0 : i32
    return %c0_i32, %arg1 : i32, i32
  }
  func.func @transform_2(%arg0: i32, %arg1: i32) -> (i32, i32) {
    %c0_i32 = arith.constant 0 : i32
    %c0_i32_0 = arith.constant 0 : i32
    return %c0_i32, %arg1 : i32, i32
  }
  func.func @transform_3(%arg0: i32, %arg1: i32) -> (i32, i32) {
    %c0_i32 = arith.constant 0 : i32
    return %arg0, %arg1 : i32, i32
  }
}

</mosaic_0001>

<llo_original>
// kernel: affine_constant_flow_forward.1
$region0: #{affine_constant_flow_forward.1}
  #allocation0 [shape = 'u32[]', space=smem, size = 0x4, offset = 0x4, fixed_abs, tag = 'smem constant byte address 0x4 - core index']
  #allocation1 [shape = 'u32[144,128]{1,0:T(1,128)}', space=vmem, size = 0x12000, scoped, tag = 'internal scratch']
  %s0 = inlined_call_operand.hbm [shape: f32[8,128], index: 0, kind: input, shape index: {}]
  %s1 = inlined_call_operand.vmem [shape: f32[1,128], index: 1, kind: input, shape index: {}]
  %s2 = inlined_call_operand.vmem [shape: f32[1,128], index: 2, kind: input, shape index: {}]
  %s3 = inlined_call_operand.hbm [shape: f32[8,128], index: 3, kind: output, shape index: {}]
  %s4 = sld [smem:[#allocation0]]
  $region26: #{affine_constant_flow_forward.1} parent=0
    _
  %s6 = ssub.s32 1, %s4
  %s7 = scalar_select 0, %s6, %s4
  $region1: #{affine_constant_flow_forward.1} parent=0
    #allocation2 [shape = 'u8[4096]{0}', space=vmem, size = 0x1000, scoped, tag = 'input window, operand 0, single buffered']
    #allocation3 [shape = 's32[1]{0}', space=sflag, size = 0x4, scoped, tag = 'scoped memory for affine_constant_flow_forward.1']
    #allocation4 [shape = 's32[1]{0}', space=sflag, size = 0x4, scoped, tag = 'scoped memory for affine_constant_flow_forward.1']
    #allocation5 [shape = 'u8[4096]{0}', space=vmem, size = 0x1000, scoped, tag = 'output window, operand 0, single buffered']
    %8 = vsyncpa [#allocation3], 0
    %9 = vsyncpa [#allocation4], 0
    // Predicated region
    $region2: #{affine_constant_flow_forward.1} parent=1 // pred_check
      _
    $region3: #{affine_constant_flow_forward.1} parent=1 // pred_check_branch
      %11 = sbr.rel (0) target = $region5
    $region4: #{affine_constant_flow_forward.1} parent=1 // pred_region
      %s13 = ssub.s32 128, 128
      %14 = vsyncadd [#allocation3], %s13
      %s16 = sshll.u32 [#allocation2], 4
      %s17 = int_to_ptr.vmem [resolvable:$true] %s16
      %19 = dma.hbm_to_vmem [thread:$0]  %s0, 128, %s17, [#allocation3]
    $region5: #{affine_constant_flow_forward.1} parent=1 // pred_fallthru
      _
    // Predicated region
    $region6: #{affine_constant_flow_forward.1} parent=1 // pred_check
      _
    $region7: #{affine_constant_flow_forward.1} parent=1 // pred_check_branch
      %21 = sbr.rel (0) target = $region9
    $region8: #{affine_constant_flow_forward.1} parent=1 // pred_region
      _
    $region9: #{affine_constant_flow_forward.1} parent=1 // pred_fallthru
      _
    // Predicated region
    $region10: #{affine_constant_flow_forward.1} parent=1 // pred_check
      _
    $region11: #{affine_constant_flow_forward.1} parent=1 // pred_check_branch
      %23 = sbr.rel (0) target = $region13
    $region12: #{affine_constant_flow_forward.1} parent=1 // pred_region
      _
    $region13: #{affine_constant_flow_forward.1} parent=1 // pred_fallthru
      _
    // Predicated region
    $region14: #{affine_constant_flow_forward.1} parent=1 // pred_check
      _
    $region15: #{affine_constant_flow_forward.1} parent=1 // pred_check_branch
      %25 = sbr.rel (0) target = $region17
    $region16: #{affine_constant_flow_forward.1} parent=1 // pred_region
      %26 = dma.done [#allocation3], 128
    $region17: #{affine_constant_flow_forward.1} parent=1 // pred_fallthru
      _
    %v27 = vld [vmem:[#allocation2] sm:$0xff]
    %v28 = vld [vmem:[%s1] sm:$0x1]
    %v29 = vmul.f32 %v28, 1.442695
    %v30 = vpow.pop %v29
    %v31 = vld [vmem:[%s2] sm:$0x1]
    %v33 = vlaneseq
    %v34 = vshrl.u32 %v33, 7
    %v35 = vsub.s32 0, %v34
    %v36 = vrot.slane %v30, %v35
    %v38 = vmul.f32 %v27, %v36
    %v40 = vlaneseq
    %v41 = vshrl.u32 %v40, 7
    %v42 = vsub.s32 0, %v41
    %v43 = vrot.slane %v31, %v42
    %v45 = vadd.f32 %v38, %v43
    %46 = vst [vmem:[#allocation5] sm:$0xff] %v45
    // Predicated region
    $region18: #{affine_constant_flow_forward.1} parent=1 // pred_check
      _
    $region19: #{affine_constant_flow_forward.1} parent=1 // pred_check_branch
      %48 = sbr.rel (0) target = $region21
    $region20: #{affine_constant_flow_forward.1} parent=1 // pred_region
      %s50 = ssub.s32 128, 128
      %51 = vsyncadd [#allocation4], %s50
      %s53 = sshll.u32 [#allocation5], 4
      %s54 = int_to_ptr.vmem [resolvable:$true] %s53
      %56 = dma.vmem_to_hbm [thread:$0]  %s54, 128, %s3, [#allocation4]
    $region21: #{affine_constant_flow_forward.1} parent=1 // pred_fallthru
      _
    // Predicated region
    $region22: #{affine_constant_flow_forward.1} parent=1 // pred_check
      _
    $region23: #{affine_constant_flow_forward.1} parent=1 // pred_check_branch
      %58 = sbr.rel (0) target = $region25
    $region24: #{affine_constant_flow_forward.1} parent=1 // pred_region
      %59 = dma.done [#allocation4], 128
    $region25: #{affine_constant_flow_forward.1} parent=1 // pred_fallthru
      _
    %60 = vsyncpa [#allocation3], 1
    %61 = vsyncpa [#allocation4], 1

</llo_original>
